<compile_context>
chip_gen: v5e
topology: v5e:2x2
jax: 0.10.0
libtpu: 0.0.40
codegen_flags: <defaults>
</compile_context>

<pallas_src>
import functools

import jax
import jax.numpy as jnp
from jax.experimental import pallas as pl
from jax.experimental.pallas import tpu as pltpu


def _round_up(x, m):
    return (x + m - 1) // m * m


def _plan_tiles(hw, num_classes, lane_budget_elems=1024 * 1024):
    """Returns (tile_n, chunk, n_tiles).

    chunk  : lanes per inner, vreg-resident loop iteration (multiple of 128).
    tile_n : lanes per DMA block (multiple of chunk; prefers exact divisors of
             hw so the tail mask compiles away).
    """
    cp = _round_up(max(num_classes, 1), 8)           # sublane-padded class count
    # ~4 vregs per (C, chunk) f32 intermediate keeps softmax/one-hot/accs in regs.
    chunk = max(128, (4096 // cp) // 128 * 128)
    if hw <= chunk:
        return hw, hw, 1                             # single full-extent block

    # DMA block budget: ~lane_budget_elems logits per block.
    max_tile = max(chunk, (lane_budget_elems // max(num_classes, 1)) // chunk * chunk)

    if hw % chunk == 0:
        n_chunks_total = hw // chunk
        # Prefer >= 2 blocks when the pixel axis is big enough (pipelining + 2nd TC).
        max_blocks = n_chunks_total if n_chunks_total < 4 else n_chunks_total // 2
        best = 1
        for d in range(1, n_chunks_total + 1):
            if (n_chunks_total % d == 0 and d <= max_blocks
                    and d * chunk <= max_tile):
                best = d
        tile_n = best * chunk                        # divides hw -> no tail mask
    else:
        tile_n = min(max_tile, (hw // chunk) * chunk)  # <= hw; ragged tail masked

    n_tiles = -(-hw // tile_n)
    return tile_n, chunk, n_tiles


def _dice_partial_kernel(pr_ref, gt_ref, tp_ref, prs_ref, gts_ref, *,
                         hw, tile_n, chunk, num_classes, n_inner):
    """Accumulates lane-wise per-class partials {tp, sum(softmax), sum(onehot)}
    into three (1, 1, C, chunk) output blocks (one set per (batch, outer) pair)."""
    o = pl.program_id(1)                 # outer pixel-block index ("parallel")
    i = pl.program_id(2)                 # inner pixel-block index (reduction axis)

    c = num_classes
    n_chunks = tile_n // chunk           # static
    has_tail = (hw % tile_n) != 0        # static (trace-time) condition

    # Hoisted loop-invariant iotas (JAX does not CSE broadcast_in_dim in loops).
    class_ids = jax.lax.broadcasted_iota(jnp.int32, (c, 1), 0)      # (C, 1)
    if has_tail:
        lane = jax.lax.broadcasted_iota(jnp.int32, (1, chunk), 1)   # (1, chunk)
        tile_base = (o * n_inner + i) * tile_n

    def chunk_step(j, carry):
        acc_tp, acc_pr, acc_gt = carry
        start = j * chunk
        if not isinstance(start, int):
            start = pl.multiple_of(start, chunk)

        logits = pr_ref[0, :, pl.ds(start, chunk)].astype(jnp.float32)  # (C, chunk)
        labels = gt_ref[0, :, pl.ds(start, chunk)].astype(jnp.int32)    # (1, chunk)

        if has_tail:
            valid = (tile_base + start + lane) < hw                     # (1, chunk)
            logits = jnp.where(valid, logits, 0.0)   # keep exp finite on pad lanes

        # Softmax over the class (sublane) axis.
        m = jnp.max(logits, axis=0, keepdims=True)                      # (1, chunk)
        e = jnp.exp(logits - m)                                         # (C, chunk)
        denom = jnp.sum(e, axis=0, keepdims=True)                       # (1, chunk), >= 1
        inv = pl.reciprocal(denom, approx=True)                         # EUP
        inv = inv * (2.0 - denom * inv)                                 # Newton -> ~f32
        sm = e * inv                                                    # (C, chunk)

        # One-hot "hit" mask; labels outside [0, C) (e.g. the 255 ignore value)
        # match no class, like PyTorch's one_hot(..., C+1)[..., :C] slice trick.
        hit = labels == class_ids                                       # (C, chunk)
        if has_tail:
            hit = jnp.logical_and(hit, valid)
            sm = jnp.where(valid, sm, 0.0)

        # Lane-wise accumulation — no in-kernel cross-lane reductions.
        acc_tp = jnp.where(hit, acc_tp + sm, acc_tp)
        acc_pr = acc_pr + sm
        acc_gt = jnp.where(hit, acc_gt + 1.0, acc_gt)
        return acc_tp, acc_pr, acc_gt

    zeros = jnp.zeros((c, chunk), jnp.float32)
    if n_chunks == 1:
        acc_tp, acc_pr, acc_gt = chunk_step(0, (zeros, zeros, zeros))
    else:
        unroll = 2 if n_chunks % 2 == 0 else 1
        acc_tp, acc_pr, acc_gt = jax.lax.fori_loop(
            0, n_chunks, chunk_step, (zeros, zeros, zeros), unroll=unroll)

    # One lane-dense write (or RMW) per output per grid step.
    @pl.when(i == 0)
    def _init():
        tp_ref[0, 0] = acc_tp
        prs_ref[0, 0] = acc_pr
        gts_ref[0, 0] = acc_gt

    @pl.when(i > 0)
    def _accum():
        tp_ref[0, 0] += acc_tp
        prs_ref[0, 0] += acc_pr
        gts_ref[0, 0] += acc_gt


def multiclass_dice_loss(pr, gt, *, num_classes, eps=1e-7, beta=1.0,
                         reduction="sum", lane_budget_elems=1024 * 1024):
    """pr: (B, C, H, W) float logits (any float dtype); gt: (B, H, W) int labels
    (255 = ignore).  Matches MulticlassDiceLoss.forward (default reduction='sum')."""
    B, C, H, W = pr.shape
    assert C == num_classes
    HW = H * W

    tile_n, chunk, n_tiles = _plan_tiles(HW, C, lane_budget_elems)
    # Second parallel grid axis over pixel blocks so v7x's 2 TensorCores are both
    # used even at B=1; a no-op cost on single-TC v5e/v6e.
    n_outer = 2 if (n_tiles >= 2 and n_tiles % 2 == 0) else 1
    n_inner = n_tiles // n_outer

    # Free reshapes only — native dtypes on both streams (no host-side upcast).
    pr_3d = pr.reshape(B, C, HW)
    gt_3d = gt.reshape(B, 1, HW)
    if (not jnp.issubdtype(gt_3d.dtype, jnp.integer)) or gt_3d.dtype.itemsize > 4:
        gt_3d = gt_3d.astype(jnp.int32)

    kernel = functools.partial(
        _dice_partial_kernel, hw=HW, tile_n=tile_n, chunk=chunk,
        num_classes=C, n_inner=n_inner)

    # Right-sized VMEM request: double-buffered input/output blocks + slack.
    pr_blk = C * tile_n * pr_3d.dtype.itemsize
    gt_blk = tile_n * gt_3d.dtype.itemsize
    out_blk = 3 * C * chunk * 4
    vmem_limit = int(min(2 * (pr_blk + gt_blk + out_blk) + (8 << 20), 64 << 20))

    part_shape = jax.ShapeDtypeStruct((B, n_outer, C, chunk), jnp.float32)
    out_spec = pl.BlockSpec((1, 1, C, chunk), lambda b, o, i: (b, o, 0, 0))

    # TODO(synk): a v7x-only variant could push the three accumulate-adds onto
    # the (idle) MXU via a ones-matrix matmul once VALU binds; not done here.
    tp_p, pr_p, gt_p = pl.pallas_call(
        kernel,
        out_shape=(part_shape, part_shape, part_shape),
        grid_spec=pltpu.PrefetchScalarGridSpec(
            num_scalar_prefetch=0,
            grid=(B, n_outer, n_inner),
            in_specs=[
                pl.BlockSpec((1, C, tile_n),
                             lambda b, o, i: (b, 0, o * n_inner + i)),
                pl.BlockSpec((1, 1, tile_n),
                             lambda b, o, i: (b, 0, o * n_inner + i)),
            ],
            out_specs=[out_spec, out_spec, out_spec],
        ),
        compiler_params=pltpu.CompilerParams(
            dimension_semantics=("parallel", "parallel", "arbitrary"),
            vmem_limit_bytes=vmem_limit,
        ),
    )(pr_3d, gt_3d)

    # Tiny epilogue in plain JAX: fold lanes + batch/outer partials, f-score, reduce.
    tp = jnp.sum(tp_p, axis=(0, 1, 3))
    sum_pr = jnp.sum(pr_p, axis=(0, 1, 3))
    sum_gt = jnp.sum(gt_p, axis=(0, 1, 3))
    fp = sum_pr - tp
    fn = sum_gt - tp
    beta2 = float(beta) ** 2
    f_score = ((1.0 + beta2) * tp + eps) / ((1.0 + beta2) * tp + beta2 * fn + fp + eps)
    loss = 1.0 - f_score                     # (C,)

    reduction = reduction.lower()
    if reduction == "none":
        return loss
    if reduction == "mean":
        return jnp.mean(loss)
    # 'sum' and 'batchwise_mean' coincide for the 1-D per-class loss vector.
    return jnp.sum(loss)


def _reference(pr, gt, *, num_classes, eps=1e-7, beta=1.0):
    """Pure-JAX reference matching the PyTorch module (reduction='sum')."""
    beta2 = float(beta) ** 2
    sm = jax.nn.softmax(pr.astype(jnp.float32), axis=1)            # (B,C,H,W)
    gt_c = jnp.where(gt == 255, num_classes, gt)
    oh = jax.nn.one_hot(gt_c, num_classes + 1)[..., :num_classes]  # (B,H,W,C)
    oh = jnp.transpose(oh, (0, 3, 1, 2)).astype(jnp.float32)
    tp = jnp.sum(oh * sm, axis=(0, 2, 3))
    fp = jnp.sum(sm, axis=(0, 2, 3)) - tp
    fn = jnp.sum(oh, axis=(0, 2, 3)) - tp
    f = ((1 + beta2) * tp + eps) / ((1 + beta2) * tp + beta2 * fn + fp + eps)
    return jnp.sum(1.0 - f)


if __name__ == "__main__":
    B, C, H, W = 2, 4, 16, 16
    key = jax.random.PRNGKey(0)
    k_pr, k_gt, k_ign = jax.random.split(key, 3)

    pr = jax.random.normal(k_pr, (B, C, H, W), dtype=jnp.float32)
    gt = jax.random.randint(k_gt, (B, H, W), 0, C, dtype=jnp.int32)
    # sprinkle some ignore (255) labels like real segmentation masks
    ignore_mask = jax.random.bernoulli(k_ign, 0.1, (B, H, W))
    gt = jnp.where(ignore_mask, jnp.int32(255), gt)

    loss = jax.block_until_ready(multiclass_dice_loss(pr, gt, num_classes=C))
    ref = jax.block_until_ready(_reference(pr, gt, num_classes=C))

    # approx-reciprocal + Newton and different accumulation order: 1e-4 tolerance.
    if not jnp.allclose(loss, ref, rtol=1e-4, atol=1e-4):
        raise AssertionError(f"mismatch: kernel={loss} ref={ref}")

    print("KERNEL_OK")
</pallas_src>

<mosaic_0001>
module attributes {stable_mosaic.version = 11 : i64} {
  func.func @_dice_partial_kernel(%arg0: i32, %arg1: i32, %arg2: i32, %arg3: memref<1x4x256xf32, #tpu.memory_space<vmem>>, %arg4: memref<1x1x256xi32, #tpu.memory_space<vmem>>, %arg5: memref<1x1x4x256xf32, #tpu.memory_space<vmem>>, %arg6: memref<1x1x4x256xf32, #tpu.memory_space<vmem>>, %arg7: memref<1x1x4x256xf32, #tpu.memory_space<vmem>>) attributes {dimension_semantics = [#tpu.dimension_semantics<parallel>, #tpu.dimension_semantics<parallel>, #tpu.dimension_semantics<arbitrary>], iteration_bounds = array<i64: 2, 1, 1>, scalar_prefetch = 0 : i64, scratch_operands = 0 : i64, tpu.core_type = #tpu.core_type<tc>, window_params = [{transform_indices = @transform_0, window_bounds = array<i64: 1, 4, 256>}, {transform_indices = @transform_1, window_bounds = array<i64: 1, 1, 256>}, {transform_indices = @transform_2, window_bounds = array<i64: 1, 1, 4, 256>}, {transform_indices = @transform_3, window_bounds = array<i64: 1, 1, 4, 256>}, {transform_indices = @transform_4, window_bounds = array<i64: 1, 1, 4, 256>}]} {
    %0 = tpu.iota {dimensions = array<i32: 0>} : vector<4x1xi32>
    %cst = arith.constant 0.000000e+00 : f32
    %1 = vector.broadcast %cst : f32 to vector<4x256xf32>
    %c0 = arith.constant 0 : index
    %c0_0 = arith.constant 0 : index
    %c0_1 = arith.constant 0 : index
    %2 = vector.load %arg3[%c0, %c0_0, %c0_1] : memref<1x4x256xf32, #tpu.memory_space<vmem>>, vector<1x4x256xf32>
    %3 = vector.shape_cast %2 : vector<1x4x256xf32> to vector<4x256xf32>
    %c0_2 = arith.constant 0 : index
    %c0_3 = arith.constant 0 : index
    %c0_4 = arith.constant 0 : index
    %4 = vector.load %arg4[%c0_2, %c0_3, %c0_4] : memref<1x1x256xi32, #tpu.memory_space<vmem>>, vector<1x1x256xi32>
    %5 = vector.shape_cast %4 : vector<1x1x256xi32> to vector<1x256xi32>
    %cst_5 = arith.constant dense<0xFF800000> : vector<256xf32>
    %6 = vector.multi_reduction <maximumf>, %3, %cst_5 [0] : vector<4x256xf32> to vector<256xf32>
    %7 = vector.shape_cast %6 : vector<256xf32> to vector<1x256xf32>
    %8 = vector.broadcast %7 : vector<1x256xf32> to vector<4x256xf32>
    %9 = arith.subf %3, %8 : vector<4x256xf32>
    %10 = math.exp %9 : vector<4x256xf32>
    %cst_6 = arith.constant dense<0.000000e+00> : vector<256xf32>
    %11 = vector.multi_reduction <add>, %10, %cst_6 [0] : vector<4x256xf32> to vector<256xf32>
    %12 = vector.shape_cast %11 : vector<256xf32> to vector<1x256xf32>
    %13 = tpu.reciprocal %12 {approx = true} : vector<1x256xf32> -> vector<1x256xf32>
    %14 = arith.mulf %12, %13 : vector<1x256xf32>
    %cst_7 = arith.constant 2.000000e+00 : f32
    %15 = vector.broadcast %cst_7 : f32 to vector<1x256xf32>
    %16 = arith.subf %15, %14 : vector<1x256xf32>
    %17 = arith.mulf %13, %16 : vector<1x256xf32>
    %18 = vector.broadcast %17 : vector<1x256xf32> to vector<4x256xf32>
    %19 = arith.mulf %10, %18 : vector<4x256xf32>
    %20 = vector.broadcast %5 : vector<1x256xi32> to vector<4x256xi32>
    %21 = vector.broadcast %0 : vector<4x1xi32> to vector<4x256xi32>
    %22 = arith.cmpi eq, %20, %21 : vector<4x256xi32>
    %23 = arith.addf %1, %19 : vector<4x256xf32>
    %24 = arith.select %22, %23, %1 : vector<4x256xi1>, vector<4x256xf32>
    %25 = arith.addf %1, %19 : vector<4x256xf32>
    %cst_8 = arith.constant 1.000000e+00 : f32
    %26 = vector.broadcast %cst_8 : f32 to vector<4x256xf32>
    %27 = arith.addf %1, %26 : vector<4x256xf32>
    %28 = arith.select %22, %27, %1 : vector<4x256xi1>, vector<4x256xf32>
    %c0_i32 = arith.constant 0 : i32
    %29 = arith.cmpi eq, %arg2, %c0_i32 : i32
    %30 = arith.extui %29 : i1 to i32
    %c0_i32_9 = arith.constant 0 : i32
    %31 = arith.cmpi ne, %30, %c0_i32_9 : i32
    scf.if %31 {
      %c0_12 = arith.constant 0 : index
      %c0_13 = arith.constant 0 : index
      %c0_14 = arith.constant 0 : index
      %c0_15 = arith.constant 0 : index
      %35 = vector.load %arg5[%c0_12, %c0_13, %c0_14, %c0_15] : memref<1x1x4x256xf32, #tpu.memory_space<vmem>>, vector<1x1x4x256xf32>
      %36 = vector.shape_cast %35 : vector<1x1x4x256xf32> to vector<4x256xf32>
      %37 = vector.shape_cast %24 : vector<4x256xf32> to vector<1x1x4x256xf32>
      tpu.vector_store %arg5[%c0_12, %c0_13, %c0_14, %c0_15], %37 {strides = array<i32>} : memref<1x1x4x256xf32, #tpu.memory_space<vmem>>, vector<1x1x4x256xf32>,
      %c0_16 = arith.constant 0 : index
      %c0_17 = arith.constant 0 : index
      %c0_18 = arith.constant 0 : index
      %c0_19 = arith.constant 0 : index
      %38 = vector.load %arg6[%c0_16, %c0_17, %c0_18, %c0_19] : memref<1x1x4x256xf32, #tpu.memory_space<vmem>>, vector<1x1x4x256xf32>
      %39 = vector.shape_cast %38 : vector<1x1x4x256xf32> to vector<4x256xf32>
      %40 = vector.shape_cast %25 : vector<4x256xf32> to vector<1x1x4x256xf32>
      tpu.vector_store %arg6[%c0_16, %c0_17, %c0_18, %c0_19], %40 {strides = array<i32>} : memref<1x1x4x256xf32, #tpu.memory_space<vmem>>, vector<1x1x4x256xf32>,
      %c0_20 = arith.constant 0 : index
      %c0_21 = arith.constant 0 : index
      %c0_22 = arith.constant 0 : index
      %c0_23 = arith.constant 0 : index
      %41 = vector.load %arg7[%c0_20, %c0_21, %c0_22, %c0_23] : memref<1x1x4x256xf32, #tpu.memory_space<vmem>>, vector<1x1x4x256xf32>
      %42 = vector.shape_cast %41 : vector<1x1x4x256xf32> to vector<4x256xf32>
      %43 = vector.shape_cast %28 : vector<4x256xf32> to vector<1x1x4x256xf32>
      tpu.vector_store %arg7[%c0_20, %c0_21, %c0_22, %c0_23], %43 {strides = array<i32>} : memref<1x1x4x256xf32, #tpu.memory_space<vmem>>, vector<1x1x4x256xf32>,
    } else {
    }
    %c0_i32_10 = arith.constant 0 : i32
    %32 = arith.cmpi sgt, %arg2, %c0_i32_10 : i32
    %33 = arith.extui %32 : i1 to i32
    %c0_i32_11 = arith.constant 0 : i32
    %34 = arith.cmpi ne, %33, %c0_i32_11 : i32
    scf.if %34 {
      %c0_12 = arith.constant 0 : index
      %c0_13 = arith.constant 0 : index
      %c0_14 = arith.constant 0 : index
      %c0_15 = arith.constant 0 : index
      %35 = vector.load %arg5[%c0_12, %c0_13, %c0_14, %c0_15] : memref<1x1x4x256xf32, #tpu.memory_space<vmem>>, vector<1x1x4x256xf32>
      %36 = vector.shape_cast %35 : vector<1x1x4x256xf32> to vector<4x256xf32>
      %37 = arith.addf %36, %24 : vector<4x256xf32>
      %c0_16 = arith.constant 0 : index
      %c0_17 = arith.constant 0 : index
      %c0_18 = arith.constant 0 : index
      %c0_19 = arith.constant 0 : index
      %38 = vector.load %arg5[%c0_16, %c0_17, %c0_18, %c0_19] : memref<1x1x4x256xf32, #tpu.memory_space<vmem>>, vector<1x1x4x256xf32>
      %39 = vector.shape_cast %38 : vector<1x1x4x256xf32> to vector<4x256xf32>
      %40 = vector.shape_cast %37 : vector<4x256xf32> to vector<1x1x4x256xf32>
      tpu.vector_store %arg5[%c0_16, %c0_17, %c0_18, %c0_19], %40 {strides = array<i32>} : memref<1x1x4x256xf32, #tpu.memory_space<vmem>>, vector<1x1x4x256xf32>,
      %c0_20 = arith.constant 0 : index
      %c0_21 = arith.constant 0 : index
      %c0_22 = arith.constant 0 : index
      %c0_23 = arith.constant 0 : index
      %41 = vector.load %arg6[%c0_20, %c0_21, %c0_22, %c0_23] : memref<1x1x4x256xf32, #tpu.memory_space<vmem>>, vector<1x1x4x256xf32>
      %42 = vector.shape_cast %41 : vector<1x1x4x256xf32> to vector<4x256xf32>
      %43 = arith.addf %42, %25 : vector<4x256xf32>
      %c0_24 = arith.constant 0 : index
      %c0_25 = arith.constant 0 : index
      %c0_26 = arith.constant 0 : index
      %c0_27 = arith.constant 0 : index
      %44 = vector.load %arg6[%c0_24, %c0_25, %c0_26, %c0_27] : memref<1x1x4x256xf32, #tpu.memory_space<vmem>>, vector<1x1x4x256xf32>
      %45 = vector.shape_cast %44 : vector<1x1x4x256xf32> to vector<4x256xf32>
      %46 = vector.shape_cast %43 : vector<4x256xf32> to vector<1x1x4x256xf32>
      tpu.vector_store %arg6[%c0_24, %c0_25, %c0_26, %c0_27], %46 {strides = array<i32>} : memref<1x1x4x256xf32, #tpu.memory_space<vmem>>, vector<1x1x4x256xf32>,
      %c0_28 = arith.constant 0 : index
      %c0_29 = arith.constant 0 : index
      %c0_30 = arith.constant 0 : index
      %c0_31 = arith.constant 0 : index
      %47 = vector.load %arg7[%c0_28, %c0_29, %c0_30, %c0_31] : memref<1x1x4x256xf32, #tpu.memory_space<vmem>>, vector<1x1x4x256xf32>
      %48 = vector.shape_cast %47 : vector<1x1x4x256xf32> to vector<4x256xf32>
      %49 = arith.addf %48, %28 : vector<4x256xf32>
      %c0_32 = arith.constant 0 : index
      %c0_33 = arith.constant 0 : index
      %c0_34 = arith.constant 0 : index
      %c0_35 = arith.constant 0 : index
      %50 = vector.load %arg7[%c0_32, %c0_33, %c0_34, %c0_35] : memref<1x1x4x256xf32, #tpu.memory_space<vmem>>, vector<1x1x4x256xf32>
      %51 = vector.shape_cast %50 : vector<1x1x4x256xf32> to vector<4x256xf32>
      %52 = vector.shape_cast %49 : vector<4x256xf32> to vector<1x1x4x256xf32>
      tpu.vector_store %arg7[%c0_32, %c0_33, %c0_34, %c0_35], %52 {strides = array<i32>} : memref<1x1x4x256xf32, #tpu.memory_space<vmem>>, vector<1x1x4x256xf32>,
    } else {
    }
    return
  }
  func.func @transform_0(%arg0: i32, %arg1: i32, %arg2: i32) -> (i32, i32, i32) {
    %c1_i32 = arith.constant 1 : i32
    %0 = arith.muli %arg1, %c1_i32 : i32
    %1 = arith.addi %0, %arg2 : i32
    %c0_i32 = arith.constant 0 : i32
    %c0_i32_0 = arith.constant 0 : i32
    return %arg0, %c0_i32, %1 : i32, i32, i32
  }
  func.func @transform_1(%arg0: i32, %arg1: i32, %arg2: i32) -> (i32, i32, i32) {
    %c1_i32 = arith.constant 1 : i32
    %0 = arith.muli %arg1, %c1_i32 : i32
    %1 = arith.addi %0, %arg2 : i32
    %c0_i32 = arith.constant 0 : i32
    %c0_i32_0 = arith.constant 0 : i32
    return %arg0, %c0_i32, %1 : i32, i32, i32
  }
  func.func @transform_2(%arg0: i32, %arg1: i32, %arg2: i32) -> (i32, i32, i32, i32) {
    %c0_i32 = arith.constant 0 : i32
    %c0_i32_0 = arith.constant 0 : i32
    %c0_i32_1 = arith.constant 0 : i32
    return %arg0, %arg1, %c0_i32, %c0_i32_0 : i32, i32, i32, i32
  }
  func.func @transform_3(%arg0: i32, %arg1: i32, %arg2: i32) -> (i32, i32, i32, i32) {
    %c0_i32 = arith.constant 0 : i32
    %c0_i32_0 = arith.constant 0 : i32
    %c0_i32_1 = arith.constant 0 : i32
    return %arg0, %arg1, %c0_i32, %c0_i32_0 : i32, i32, i32, i32
  }
  func.func @transform_4(%arg0: i32, %arg1: i32, %arg2: i32) -> (i32, i32, i32, i32) {
    %c0_i32 = arith.constant 0 : i32
    %c0_i32_0 = arith.constant 0 : i32
    %c0_i32_1 = arith.constant 0 : i32
    return %arg0, %arg1, %c0_i32, %c0_i32_0 : i32, i32, i32, i32
  }
}

</mosaic_0001>

<llo_original>
// kernel: tpu_custom_call.1
$region0: #{tpu_custom_call.1}
  #allocation0 [shape = 'u32[]', space=smem, size = 0x4, offset = 0x4, fixed_abs, tag = 'smem constant byte address 0x4 - core index']
  #allocation1 [shape = 'u32[72,128]{1,0:T(1,128)}', space=vmem, size = 0x9000, scoped, tag = 'internal scratch']
  %s0 = inlined_call_operand.hbm [shape: f32[2,4,256], index: 0, kind: input, shape index: {}]
  %s1 = inlined_call_operand.hbm [shape: s32[2,1,256], index: 1, kind: input, shape index: {}]
  %s2 = inlined_call_operand.hbm [shape: f32[2,1,4,256], index: 2, kind: output, shape index: {0}]
  %s3 = inlined_call_operand.hbm [shape: f32[2,1,4,256], index: 3, kind: output, shape index: {1}]
  %s4 = inlined_call_operand.hbm [shape: f32[2,1,4,256], index: 4, kind: output, shape index: {2}]
  %5 = xla_tuple %s2, %s3, %s4
  %s6 = sld [smem:[#allocation0]]
  $region73: #{tpu_custom_call.1} parent=0
    _
  %s8 = ssub.s32 1, %s6
  %s9 = scalar_select 0, %s8, %s6
  $region1: #{tpu_custom_call.1} parent=0
    #allocation2 [shape = 'u8[8192]{0}', space=vmem, size = 0x2000, scoped, tag = 'input window, operand 0']
    #allocation3 [shape = 's32[2]{0}', space=sflag, size = 0x8, scoped, tag = 'scoped memory for tpu_custom_call.1']
    #allocation4 [shape = 's32[2]{0}', space=sflag, size = 0x8, scoped, tag = 'scoped memory for tpu_custom_call.1']
    #allocation5 [shape = 'u8[2048]{0}', space=vmem, size = 0x800, scoped, tag = 'input window, operand 1']
    #allocation6 [shape = 's32[2]{0}', space=sflag, size = 0x8, scoped, tag = 'scoped memory for tpu_custom_call.1']
    #allocation7 [shape = 'u8[8192]{0}', space=vmem, size = 0x2000, scoped, tag = 'output window, operand 0']
    #allocation8 [shape = 'u8[8192]{0}', space=vmem, size = 0x2000, scoped, tag = 'output window, operand 1']
    #allocation9 [shape = 's32[2]{0}', space=sflag, size = 0x8, scoped, tag = 'scoped memory for tpu_custom_call.1']
    #allocation10 [shape = 'u8[8192]{0}', space=vmem, size = 0x2000, scoped, tag = 'output window, operand 2']
    %10 = vsyncpa [#allocation3], 0
    %s11 = scalar_lea.sflag [#allocation3], 1
    %12 = vsyncpa %s11, 0
    %13 = vsyncpa [#allocation6], 0
    %s14 = scalar_lea.sflag [#allocation6], 1
    %15 = vsyncpa %s14, 0
    %16 = vsyncpa [#allocation4], 0
    %s17 = scalar_lea.sflag [#allocation4], 1
    %18 = vsyncpa %s17, 0
    %19 = vsyncpa [#allocation9], 0
    %s20 = scalar_lea.sflag [#allocation9], 1
    %21 = vsyncpa %s20, 0
    loop: start=0, step=1, limit=4
    $region2: #{tpu_custom_call.1} parent=1 // loop_pre_header
      _
    $region3: #{tpu_custom_call.1} parent=1 // loop_header
      %s23 = sphi 0, %s27
      %p24 = scmp.ge.s32.totalorder %s23, 4
      %s30 = sphi 0, %s49
      %s31 = sphi 0, %s45
      %s32 = sphi 0, %s41
      %s33 = sphi 0, %s30
      %s34 = sphi 0, %s31
      %s35 = sphi 0, %s32
      %s36 = sphi 0, %s33
      %s37 = sphi 0, %s34
      %s38 = sphi 0, %s35
      %s56 = sphi 0, %s58
      %s59 = sphi 0, %s56
      %s60 = sphi 0, %s59
      %s76 = sphi 0, %s60
      %s86 = sphi 0, %s88
      %s89 = sphi 0, %s86
      %s90 = sphi 0, %s89
      %s106 = sphi 0, %s90
      %s114 = sphi 0, %s116
      %s117 = sphi 0, %s114
      %s118 = sphi 0, %s117
      %s134 = sphi 0, %s118
      %s142 = sphi 0, %s144
      %s145 = sphi 0, %s142
      %s146 = sphi 0, %s145
      %s162 = sphi 0, %s146
      %s170 = sphi 0, %s172
      %s173 = sphi 0, %s170
      %s174 = sphi 0, %s173
      %s190 = sphi 0, %s174
    $region4: #{tpu_custom_call.1} parent=1 // loop_header_branch
      %26 = sbr.rel (%p24) target = $region8
    $region5: #{tpu_custom_call.1} parent=1 // loop_body
      %s28 = ssub.s32 %s23, 1
      %s29 = ssub.s32 %s23, 2
      %s39 = sadd.s32 1, %s32
      %p40 = scmp.ge.s32.totalorder %s39, 1
      %s41 = scalar_select %p40, 0, %s39
      %s42 = sadd.s32 1, %s31
      %s43 = scalar_select %p40, %s42, %s31
      %p44 = scmp.ge.s32.totalorder %s43, 1
      %s45 = scalar_select %p44, 0, %s43
      %s46 = sadd.s32 1, %s30
      %s47 = scalar_select %p44, %s46, %s30
      %p48 = scmp.ge.s32.totalorder %s47, 2
      %s49 = scalar_select %p48, 0, %s47
      %s50 = sadd.s32 %s31, %s32
      %s51 = sadd.s32 %s45, %s41
      %s52 = ssub.s32 %s30, %s49
      %s53 = ssub.s32 %s50, %s51
      %s54 = sor.u32 %s52, %s53
      %p55 = scmp.eq.s32.totalorder %s54, 0
      %s57 = sadd.s32 %s56, 1
      %s58 = scalar_select %p55, %s56, %s57
      %p61 = pneg %p55
      %p62 = scmp.eq.s32.totalorder %s23, 1
      %p63 = por %p61, %p62
      %p64 = scmp.ne.s32.totalorder %s56, %s59
      %p65 = scmp.eq.s32.totalorder %s23, 0
      %p66 = por %p64, %p65
      %p67 = scmp.ne.s32.totalorder %s56, %s59
      %p68 = scmp.eq.s32.totalorder %s28, 1
      %p69 = por %p67, %p68
      %p70 = scmp.ne.s32.totalorder %s59, %s60
      %p71 = scmp.eq.s32.totalorder %s28, 0
      %p72 = por %p70, %p71
      %p73 = scmp.ne.s32.totalorder %s59, %s60
      %p74 = scmp.eq.s32.totalorder %s29, 1
      %p75 = por %p73, %p74
      %p77 = scmp.ne.s32.totalorder %s60, %s76
      %p78 = scmp.eq.s32.totalorder %s29, 0
      %p79 = por %p77, %p78
      %s80 = sadd.s32 %s31, %s32
      %s81 = sadd.s32 %s45, %s41
      %s82 = ssub.s32 %s30, %s49
      %s83 = ssub.s32 %s80, %s81
      %s84 = sor.u32 %s82, %s83
      %p85 = scmp.eq.s32.totalorder %s84, 0
      %s87 = sadd.s32 %s86, 1
      %s88 = scalar_select %p85, %s86, %s87
      %p91 = pneg %p85
      %p92 = scmp.eq.s32.totalorder %s23, 1
      %p93 = por %p91, %p92
      %p94 = scmp.ne.s32.totalorder %s86, %s89
      %p95 = scmp.eq.s32.totalorder %s23, 0
      %p96 = por %p94, %p95
      %p97 = scmp.ne.s32.totalorder %s86, %s89
      %p98 = scmp.eq.s32.totalorder %s28, 1
      %p99 = por %p97, %p98
      %p100 = scmp.ne.s32.totalorder %s89, %s90
      %p101 = scmp.eq.s32.totalorder %s28, 0
      %p102 = por %p100, %p101
      %p103 = scmp.ne.s32.totalorder %s89, %s90
      %p104 = scmp.eq.s32.totalorder %s29, 1
      %p105 = por %p103, %p104
      %p107 = scmp.ne.s32.totalorder %s90, %s106
      %p108 = scmp.eq.s32.totalorder %s29, 0
      %p109 = por %p107, %p108
      %s110 = ssub.s32 %s30, %s49
      %s111 = ssub.s32 %s31, %s45
      %s112 = sor.u32 %s110, %s111
      %p113 = scmp.eq.s32.totalorder %s112, 0
      %s115 = sadd.s32 %s114, 1
      %s116 = scalar_select %p113, %s114, %s115
      %p119 = pneg %p113
      %p120 = scmp.eq.s32.totalorder %s23, 1
      %p121 = por %p119, %p120
      %p122 = scmp.ne.s32.totalorder %s114, %s117
      %p123 = scmp.eq.s32.totalorder %s23, 0
      %p124 = por %p122, %p123
      %p125 = scmp.ne.s32.totalorder %s114, %s117
      %p126 = scmp.eq.s32.totalorder %s28, 1
      %p127 = por %p125, %p126
      %p128 = scmp.ne.s32.totalorder %s117, %s118
      %p129 = scmp.eq.s32.totalorder %s28, 0
      %p130 = por %p128, %p129
      %p131 = scmp.ne.s32.totalorder %s117, %s118
      %p132 = scmp.eq.s32.totalorder %s29, 1
      %p133 = por %p131, %p132
      %p135 = scmp.ne.s32.totalorder %s118, %s134
      %p136 = scmp.eq.s32.totalorder %s29, 0
      %p137 = por %p135, %p136
      %s138 = ssub.s32 %s30, %s49
      %s139 = ssub.s32 %s31, %s45
      %s140 = sor.u32 %s138, %s139
      %p141 = scmp.eq.s32.totalorder %s140, 0
      %s143 = sadd.s32 %s142, 1
      %s144 = scalar_select %p141, %s142, %s143
      %p147 = pneg %p141
      %p148 = scmp.eq.s32.totalorder %s23, 1
      %p149 = por %p147, %p148
      %p150 = scmp.ne.s32.totalorder %s142, %s145
      %p151 = scmp.eq.s32.totalorder %s23, 0
      %p152 = por %p150, %p151
      %p153 = scmp.ne.s32.totalorder %s142, %s145
      %p154 = scmp.eq.s32.totalorder %s28, 1
      %p155 = por %p153, %p154
      %p156 = scmp.ne.s32.totalorder %s145, %s146
      %p157 = scmp.eq.s32.totalorder %s28, 0
      %p158 = por %p156, %p157
      %p159 = scmp.ne.s32.totalorder %s145, %s146
      %p160 = scmp.eq.s32.totalorder %s29, 1
      %p161 = por %p159, %p160
      %p163 = scmp.ne.s32.totalorder %s146, %s162
      %p164 = scmp.eq.s32.totalorder %s29, 0
      %p165 = por %p163, %p164
      %s166 = ssub.s32 %s30, %s49
      %s167 = ssub.s32 %s31, %s45
      %s168 = sor.u32 %s166, %s167
      %p169 = scmp.eq.s32.totalorder %s168, 0
      %s171 = sadd.s32 %s170, 1
      %s172 = scalar_select %p169, %s170, %s171
      %p175 = pneg %p169
      %p176 = scmp.eq.s32.totalorder %s23, 1
      %p177 = por %p175, %p176
      %p178 = scmp.ne.s32.totalorder %s170, %s173
      %p179 = scmp.eq.s32.totalorder %s23, 0
      %p180 = por %p178, %p179
      %p181 = scmp.ne.s32.totalorder %s170, %s173
      %p182 = scmp.eq.s32.totalorder %s28, 1
      %p183 = por %p181, %p182
      %p184 = scmp.ne.s32.totalorder %s173, %s174
      %p185 = scmp.eq.s32.totalorder %s28, 0
      %p186 = por %p184, %p185
      %p187 = scmp.ne.s32.totalorder %s173, %s174
      %p188 = scmp.eq.s32.totalorder %s29, 1
      %p189 = por %p187, %p188
      %p191 = scmp.ne.s32.totalorder %s174, %s190
      %p192 = scmp.eq.s32.totalorder %s29, 0
      %p193 = por %p191, %p192
      %p194 = scmp.le.s32.totalorder 1, %s23
      %p195 = scmp.lt.s32.totalorder %s23, 3
      %p196 = pnand %p194, %p195
      %p197 = pneg %p196
      // Predicated region
      $region9: #{tpu_custom_call.1} parent=5 // pred_check
        _
      $region10: #{tpu_custom_call.1} parent=5 // pred_check_branch
        %199 = sbr.rel (%p196) target = $region12
      $region11: #{tpu_custom_call.1} parent=5 // pred_region
        %s200 = ssub.s32 %s23, 1
      $region12: #{tpu_custom_call.1} parent=5 // pred_fallthru
        _
      %p201 = scmp.lt.s32.totalorder %s23, 2
      // Predicated region
      $region13: #{tpu_custom_call.1} parent=5 // pred_check
        %p202 = pneg %p201
      $region14: #{tpu_custom_call.1} parent=5 // pred_check_branch
        %204 = sbr.rel (%p202) target = $region16
      $region15: #{tpu_custom_call.1} parent=5 // pred_region
        // Predicated region
        $region17: #{tpu_custom_call.1} parent=15 // pred_check
          %p205 = pneg %p66
        $region18: #{tpu_custom_call.1} parent=15 // pred_check_branch
          %207 = sbr.rel (%p205) target = $region20
        $region19: #{tpu_custom_call.1} parent=15 // pred_region
          %s208 = sand.u32 %s56, 1
          %s209 = scalar_lea.sflag [#allocation3], %s208
          %s210 = sand.u32 %s56, 1
          %s211 = smul.addr %s210, 8
          %s212 = scalar_lea.vmem [#allocation2], %s211
          %s213 = sadd.s32 %s31, %s32
          %s214 = smul.u32 2, %s213
          %216 = vsyncadd %s209, 0
          %s217 = smul.addr %s30, 2
          %s218 = sadd.s32 %s214, %s217
          %s219 = smul.addr %s218, 4
          %s220 = scalar_lea.hbm %s0, %s219
          %s222 = sshll.u32 %s220, 4
          %s223 = int_to_ptr.hbm [resolvable:$true] %s222
          %s224 = sshll.u32 %s212, 4
          %s225 = int_to_ptr.vmem [resolvable:$true] %s224
          %227 = dma.hbm_to_vmem [thread:$0]  %s223, 128, %s225, %s209
        $region20: #{tpu_custom_call.1} parent=15 // pred_fallthru
          _
        // Predicated region
        $region21: #{tpu_custom_call.1} parent=15 // pred_check
          %p228 = pneg %p96
        $region22: #{tpu_custom_call.1} parent=15 // pred_check_branch
          %230 = sbr.rel (%p228) target = $region24
        $region23: #{tpu_custom_call.1} parent=15 // pred_region
          %s231 = sand.u32 %s86, 1
          %s232 = scalar_lea.sflag [#allocation6], %s231
          %s233 = sand.u32 %s86, 1
          %s234 = smul.addr %s233, 2
          %s235 = scalar_lea.vmem [#allocation5], %s234
          %s236 = sadd.s32 %s31, %s32
          %s237 = smul.u32 2, %s236
          %239 = vsyncadd %s232, 0
          %s240 = smul.addr %s30, 2
          %s241 = sadd.s32 %s237, %s240
          %s242 = scalar_lea.hbm %s1, %s241
          %s244 = sshll.u32 %s242, 4
          %s245 = int_to_ptr.hbm [resolvable:$true] %s244
          %s246 = sshll.u32 %s235, 4
          %s247 = int_to_ptr.vmem [resolvable:$true] %s246
          %249 = dma.hbm_to_vmem [thread:$0]  %s245, 32, %s247, %s232
        $region24: #{tpu_custom_call.1} parent=15 // pred_fallthru
          _
      $region16: #{tpu_custom_call.1} parent=5 // pred_fallthru
        _
      %p250 = scmp.le.s32.totalorder 1, %s23
      %p251 = scmp.lt.s32.totalorder %s23, 3
      %p252 = pnand %p250, %p251
      %p253 = pneg %p252
      // Predicated region
      $region25: #{tpu_custom_call.1} parent=5 // pred_check
        _
      $region26: #{tpu_custom_call.1} parent=5 // pred_check_branch
        %255 = sbr.rel (%p252) target = $region28
      $region27: #{tpu_custom_call.1} parent=5 // pred_region
        %s256 = ssub.s32 %s23, 1
        %s257 = sand.u32 %s59, 1
        %s258 = scalar_lea.sflag [#allocation3], %s257
        %s259 = sand.u32 %s59, 1
        %s260 = smul.addr %s259, 8
        %s261 = scalar_lea.vmem [#allocation2], %s260
        // Predicated region
        $region29: #{tpu_custom_call.1} parent=27 // pred_check
          %p262 = pneg %p72
        $region30: #{tpu_custom_call.1} parent=27 // pred_check_branch
          %264 = sbr.rel (%p262) target = $region32
        $region31: #{tpu_custom_call.1} parent=27 // pred_region
          %266 = dma.done %s258, 128
        $region32: #{tpu_custom_call.1} parent=27 // pred_fallthru
          _
        %s267 = sand.u32 %s89, 1
        %s268 = scalar_lea.sflag [#allocation6], %s267
        %s269 = sand.u32 %s89, 1
        %s270 = smul.addr %s269, 2
        %s271 = scalar_lea.vmem [#allocation5], %s270
        // Predicated region
        $region33: #{tpu_custom_call.1} parent=27 // pred_check
          %p272 = pneg %p102
        $region34: #{tpu_custom_call.1} parent=27 // pred_check_branch
          %274 = sbr.rel (%p272) target = $region36
        $region35: #{tpu_custom_call.1} parent=27 // pred_region
          %276 = dma.done %s268, 32
        $region36: #{tpu_custom_call.1} parent=27 // pred_fallthru
          _
        %s277 = sand.u32 %s59, 1
        %s278 = scalar_lea.sflag [#allocation3], %s277
        %s279 = sand.u32 %s59, 1
        %s280 = smul.addr %s279, 8
        %s281 = scalar_lea.vmem [#allocation2], %s280
        %p282 = pneg %p72
        %p283 = pneg %p69
        %s284 = sand.u32 %s89, 1
        %s285 = scalar_lea.sflag [#allocation6], %s284
        %s286 = sand.u32 %s89, 1
        %s287 = smul.addr %s286, 2
        %s288 = scalar_lea.vmem [#allocation5], %s287
        %p289 = pneg %p102
        %p290 = pneg %p99
        %p291 = pneg %p130
        %p292 = pneg %p127
        %s293 = sand.u32 %s117, 1
        %s294 = scalar_lea.sflag [#allocation4], %s293
        %s295 = sand.u32 %s117, 1
        %s296 = smul.addr %s295, 8
        %s297 = scalar_lea.vmem [#allocation7], %s296
        %p298 = pneg %p158
        %p299 = pneg %p155
        %s300 = sand.u32 %s28, 1
        %s301 = scalar_lea.sflag [#allocation9], %s300
        %s302 = sand.u32 %s145, 1
        %s303 = smul.addr %s302, 8
        %s304 = scalar_lea.vmem [#allocation8], %s303
        %p305 = pneg %p186
        %p306 = pneg %p183
        %s307 = sand.u32 %s28, 1
        %s308 = scalar_lea.sflag [#allocation9], %s307
        %s309 = sand.u32 %s173, 1
        %s310 = smul.addr %s309, 8
        %s311 = scalar_lea.vmem [#allocation10], %s310
        %s312 = sadd.s32 %s34, %s35
        %s313 = smul.u32 2, %s312
        %s314 = sadd.s32 %s34, %s35
        %s315 = smul.u32 2, %s314
        %v316 = vlaneseq
        %v317 = vshrl.u32 %v316, 7
        %v318 = vld [vmem:[%s261] sm:$0xff]
        %v319 = vld [vmem:[%s271] sm:$0x3]
        %321 = vst [vmem:[#allocation1] ss:$2 sm:$0xff] %v318
        %v322 = vld.sshfl [vmem:[#allocation1] sm:$0xff pattern:$0x75316420]
        %v323 = vld.sshfl [vmem:[#allocation1 + $0x8] sm:$0xff pattern:$0x75316420]
        %vm326 = vcmask 1043456
        %v327 = vsel %vm326, %v322, -inf
        %v328 = vrot.slane %v327, 4
        %v329 = vmax.f32 %v327, %v328
        %v330 = vrot.slane %v329, 2
        %v331 = vmax.f32 %v329, %v330
        %v332 = vrot.slane %v331, 1
        %v333 = vmax.f32 %v331, %v332
        %v334 = vsel %vm326, %v323, -inf
        %v335 = vrot.slane %v334, 4
        %v336 = vmax.f32 %v334, %v335
        %v337 = vrot.slane %v336, 2
        %v338 = vmax.f32 %v336, %v337
        %v339 = vrot.slane %v338, 1
        %v340 = vmax.f32 %v338, %v339
        %v343 = vrot.slane %v340, 4
        %v344 = vsel %vm326, %v333, %v343
        %v346 = vsub.f32 %v318, %v344
        %v347 = vmul.f32 %v346, 1.442695
        %v348 = vpow.pop %v347
        %350 = vst [vmem:[#allocation1] ss:$2 sm:$0xff] %v348
        %v351 = vld.sshfl [vmem:[#allocation1] sm:$0xff pattern:$0x75316420]
        %v352 = vld.sshfl [vmem:[#allocation1 + $0x8] sm:$0xff pattern:$0x75316420]
        %v355 = vsel %vm326, %v351, 0.0
        %v356 = vrot.slane %v355, 4
        %v357 = vadd.f32 %v355, %v356
        %v358 = vrot.slane %v357, 2
        %v359 = vadd.f32 %v357, %v358
        %v360 = vrot.slane %v359, 1
        %v361 = vadd.f32 %v359, %v360
        %v362 = vsel %vm326, %v352, 0.0
        %v363 = vrot.slane %v362, 4
        %v364 = vadd.f32 %v362, %v363
        %v365 = vrot.slane %v364, 2
        %v366 = vadd.f32 %v364, %v365
        %v367 = vrot.slane %v366, 1
        %v368 = vadd.f32 %v366, %v367
        %v369 = vrcp.pop %v361
        %v370 = vrcp.pop %v368
        %v371 = vmul.f32 %v361, %v369
        %v372 = vmul.f32 %v368, %v370
        %v373 = vsub.f32 2.0, %v371
        %v374 = vsub.f32 2.0, %v372
        %v375 = vmul.f32 %v369, %v373
        %v376 = vmul.f32 %v370, %v374
        %v379 = vrot.slane %v376, 4
        %v380 = vsel %vm326, %v375, %v379
        %v382 = vmul.f32 %v348, %v380
        %v383 = vperm.slane %v319, 0
        %v384 = vperm.slane %v319, 1
        %vm385 = vcmp.eq.s32.totalorder %v383, %v317
        %vm386 = vcmp.eq.s32.totalorder %v384, %v317
        %v387 = vadd.f32 %v382, 0.0
        %389 = vst [vmem:[#allocation1] ss:$2 sm:$0xff] %v387
        %v390 = vld.sshfl [vmem:[#allocation1] sm:$0xff pattern:$0x75316420]
        %v391 = vld.sshfl [vmem:[#allocation1 + $0x8] sm:$0xff pattern:$0x75316420]
        %v394 = vsel %vm385, %v390, 0.0
        %v395 = vsel %vm386, %v391, 0.0
        %v396 = vsel %vm385, 1.0, 0.0
        %v397 = vsel %vm386, 1.0, 0.0
        %p398 = scmp.eq.s32.totalorder %s35, 0
        // Predicated region
        $region37: #{tpu_custom_call.1} parent=27 // pred_check
          %p399 = pneg %p398
        $region38: #{tpu_custom_call.1} parent=27 // pred_check_branch
          %401 = sbr.rel (%p399) target = $region40
        $region39: #{tpu_custom_call.1} parent=27 // pred_region
          %v404 = vrot.slane %v395, 4
          %v405 = vsel %vm326, %v394, %v404
          %407 = vst [vmem:[%s297] sm:$0xff] %v405
          %408 = vst [vmem:[%s304] sm:$0xff] %v387
          %v411 = vrot.slane %v397, 4
          %v412 = vsel %vm326, %v396, %v411
          %414 = vst [vmem:[%s311] sm:$0xff] %v412
        $region40: #{tpu_custom_call.1} parent=27 // pred_fallthru
          _
        %p415 = scmp.gt.s32.totalorder %s35, 0
        // Predicated region
        $region41: #{tpu_custom_call.1} parent=27 // pred_check
          %p416 = pneg %p415
        $region42: #{tpu_custom_call.1} parent=27 // pred_check_branch
          %418 = sbr.rel (%p416) target = $region44
        $region43: #{tpu_custom_call.1} parent=27 // pred_region
          %v419 = vld [vmem:[%s297] sm:$0xff]
          %v422 = vrot.slane %v395, 4
          %v423 = vsel %vm326, %v394, %v422
          %v425 = vadd.f32 %v419, %v423
          %426 = vst [vmem:[%s297] sm:$0xff] %v425
          %v427 = vld [vmem:[%s304] sm:$0xff]
          %v428 = vadd.f32 %v427, %v387
          %429 = vst [vmem:[%s304] sm:$0xff] %v428
          %v430 = vld [vmem:[%s311] sm:$0xff]
          %v433 = vrot.slane %v397, 4
          %v434 = vsel %vm326, %v396, %v433
          %v436 = vadd.f32 %v430, %v434
          %437 = vst [vmem:[%s311] sm:$0xff] %v436
        $region44: #{tpu_custom_call.1} parent=27 // pred_fallthru
          _
        %s438 = sand.u32 %s117, 1
        %s439 = scalar_lea.sflag [#allocation4], %s438
        %s440 = sand.u32 %s117, 1
        %s441 = smul.addr %s440, 8
        %s442 = scalar_lea.vmem [#allocation7], %s441
        %s443 = sand.u32 %s28, 1
        %s444 = scalar_lea.sflag [#allocation9], %s443
        %s445 = sand.u32 %s145, 1
        %s446 = smul.addr %s445, 8
        %s447 = scalar_lea.vmem [#allocation8], %s446
        %s448 = sand.u32 %s28, 1
        %s449 = scalar_lea.sflag [#allocation9], %s448
        %s450 = sand.u32 %s173, 1
        %s451 = smul.addr %s450, 8
        %s452 = scalar_lea.vmem [#allocation10], %s451
        // Predicated region
        $region45: #{tpu_custom_call.1} parent=27 // pred_check
          %p453 = pneg %p127
        $region46: #{tpu_custom_call.1} parent=27 // pred_check_branch
          %455 = sbr.rel (%p453) target = $region48
        $region47: #{tpu_custom_call.1} parent=27 // pred_region
          %457 = vsyncadd %s439, 0
          %s458 = smul.addr %s34, 2
          %s459 = smul.addr %s33, 2
          %s460 = sadd.s32 %s458, %s459
          %s461 = smul.addr %s460, 4
          %s462 = scalar_lea.hbm %s2, %s461
          %s464 = sshll.u32 %s442, 4
          %s465 = int_to_ptr.vmem [resolvable:$true] %s464
          %s466 = sshll.u32 %s462, 4
          %s467 = int_to_ptr.hbm [resolvable:$true] %s466
          %469 = dma.vmem_to_hbm [thread:$0]  %s465, 128, %s467, %s439
        $region48: #{tpu_custom_call.1} parent=27 // pred_fallthru
          _
        // Predicated region
        $region49: #{tpu_custom_call.1} parent=27 // pred_check
          %p470 = pneg %p155
        $region50: #{tpu_custom_call.1} parent=27 // pred_check_branch
          %472 = sbr.rel (%p470) target = $region52
        $region51: #{tpu_custom_call.1} parent=27 // pred_region
          %474 = vsyncadd %s444, 0
          %s475 = smul.addr %s34, 2
          %s476 = smul.addr %s33, 2
          %s477 = sadd.s32 %s475, %s476
          %s478 = smul.addr %s477, 4
          %s479 = scalar_lea.hbm %s3, %s478
          %s481 = sshll.u32 %s447, 4
          %s482 = int_to_ptr.vmem [resolvable:$true] %s481
          %s483 = sshll.u32 %s479, 4
          %s484 = int_to_ptr.hbm [resolvable:$true] %s483
          %486 = dma.vmem_to_hbm [thread:$0]  %s482, 128, %s484, %s444
        $region52: #{tpu_custom_call.1} parent=27 // pred_fallthru
          _
        // Predicated region
        $region53: #{tpu_custom_call.1} parent=27 // pred_check
          %p487 = pneg %p183
        $region54: #{tpu_custom_call.1} parent=27 // pred_check_branch
          %489 = sbr.rel (%p487) target = $region56
        $region55: #{tpu_custom_call.1} parent=27 // pred_region
          %491 = vsyncadd %s449, 0
          %s492 = smul.addr %s34, 2
          %s493 = smul.addr %s33, 2
          %s494 = sadd.s32 %s492, %s493
          %s495 = smul.addr %s494, 4
          %s496 = scalar_lea.hbm %s4, %s495
          %s498 = sshll.u32 %s452, 4
          %s499 = int_to_ptr.vmem [resolvable:$true] %s498
          %s500 = sshll.u32 %s496, 4
          %s501 = int_to_ptr.hbm [resolvable:$true] %s500
          %503 = dma.vmem_to_hbm [thread:$0]  %s499, 128, %s501, %s449
        $region56: #{tpu_custom_call.1} parent=27 // pred_fallthru
          _
      $region28: #{tpu_custom_call.1} parent=5 // pred_fallthru
        _
      %p504 = scmp.le.s32.totalorder 2, %s23
      // Predicated region
      $region57: #{tpu_custom_call.1} parent=5 // pred_check
        %p505 = pneg %p504
      $region58: #{tpu_custom_call.1} parent=5 // pred_check_branch
        %507 = sbr.rel (%p505) target = $region60
      $region59: #{tpu_custom_call.1} parent=5 // pred_region
        %s508 = ssub.s32 %s23, 2
        // Predicated region
        $region61: #{tpu_custom_call.1} parent=59 // pred_check
          %p509 = pneg %p133
        $region62: #{tpu_custom_call.1} parent=59 // pred_check_branch
          %511 = sbr.rel (%p509) target = $region64
        $region63: #{tpu_custom_call.1} parent=59 // pred_region
          %s512 = sand.u32 %s118, 1
          %s513 = scalar_lea.sflag [#allocation4], %s512
          %s514 = sand.u32 %s118, 1
          %s515 = smul.addr %s514, 8
          %s516 = scalar_lea.vmem [#allocation7], %s515
          %518 = dma.done %s513, 128
        $region64: #{tpu_custom_call.1} parent=59 // pred_fallthru
          _
        // Predicated region
        $region65: #{tpu_custom_call.1} parent=59 // pred_check
          %p519 = pneg %p161
        $region66: #{tpu_custom_call.1} parent=59 // pred_check_branch
          %521 = sbr.rel (%p519) target = $region68
        $region67: #{tpu_custom_call.1} parent=59 // pred_region
          %s522 = sand.u32 %s29, 1
          %s523 = scalar_lea.sflag [#allocation9], %s522
          %s524 = sand.u32 %s146, 1
          %s525 = smul.addr %s524, 8
          %s526 = scalar_lea.vmem [#allocation8], %s525
          %528 = dma.done %s523, 128
        $region68: #{tpu_custom_call.1} parent=59 // pred_fallthru
          _
        // Predicated region
        $region69: #{tpu_custom_call.1} parent=59 // pred_check
          %p529 = pneg %p189
        $region70: #{tpu_custom_call.1} parent=59 // pred_check_branch
          %531 = sbr.rel (%p529) target = $region72
        $region71: #{tpu_custom_call.1} parent=59 // pred_region
          %s532 = sand.u32 %s29, 1
          %s533 = scalar_lea.sflag [#allocation9], %s532
          %s534 = sand.u32 %s174, 1
          %s535 = smul.addr %s534, 8
          %s536 = scalar_lea.vmem [#allocation10], %s535
          %538 = dma.done %s533, 128
        $region72: #{tpu_custom_call.1} parent=59 // pred_fallthru
          _
      $region60: #{tpu_custom_call.1} parent=5 // pred_fallthru
        _
    $region6: #{tpu_custom_call.1} parent=1 // loop_footer
      %s27 = sadd.s32 1, %s23
    $region7: #{tpu_custom_call.1} parent=1 // loop_footer_branch
      %22 = sbr.rel target = $region3
    $region8: #{tpu_custom_call.1} parent=1 // loop_exit
      _
    %539 = vsyncpa [#allocation3], 1
    %s540 = scalar_lea.sflag [#allocation3], 1
    %541 = vsyncpa %s540, 1
    %542 = vsyncpa [#allocation6], 1
    %s543 = scalar_lea.sflag [#allocation6], 1
    %544 = vsyncpa %s543, 1
    %545 = vsyncpa [#allocation4], 1
    %s546 = scalar_lea.sflag [#allocation4], 1
    %547 = vsyncpa %s546, 1
    %548 = vsyncpa [#allocation9], 1
    %s549 = scalar_lea.sflag [#allocation9], 1
    %550 = vsyncpa %s549, 1

</llo_original>
